<compile_context>
chip_gen: v7x
topology: tpu7x:2x2x1
jax: 0.10.0
libtpu: 0.0.40
codegen_flags: <defaults>
</compile_context>

<pallas_src>
import functools

import jax
import jax.numpy as jnp
from jax.experimental import pallas as pl
from jax.experimental.pallas import tpu as pltpu


def _weight_norm(v, g):
    """PyTorch weight_norm (dim=0) for Conv1d weights v:(O,I,K), g:(O,1,1)."""
    norm = jnp.sqrt(jnp.sum(v.astype(jnp.float32) ** 2, axis=(1, 2), keepdims=True))
    return g.astype(jnp.float32) * v.astype(jnp.float32) / norm


def _round_up(x, m):
    return (x + m - 1) // m * m


def _temporal_block_kernel(*refs, k, dilation, pad, tile_l, has_downsample):
    """One (batch, L-tile) per grid step.

    refs (has_downsample=True):
      x_ref (1,C_in,tile_l), w1 (C_out,K*C_in), b1 (C_out,1),
      w2 (C_out,K*C_out), b2 (C_out,1), wd (C_out,C_in), bd (C_out,1),
      o_ref (1,C_out,tile_l), xp (C_in,pad+tile_l), hp (C_out,pad+tile_l)
    refs (has_downsample=False): same without wd/bd (res = x, exact).
    """
    if has_downsample:
        (x_ref, w1_ref, b1_ref, w2_ref, b2_ref, wd_ref, bd_ref,
         o_ref, xp_ref, hp_ref) = refs
    else:
        (x_ref, w1_ref, b1_ref, w2_ref, b2_ref,
         o_ref, xp_ref, hp_ref) = refs
        wd_ref = bd_ref = None

    lt = pl.program_id(1)
    cdt = xp_ref.dtype  # MXU operand dtype (bf16 by default); accum stays f32

    # --- causal halo (fused Chomp1d): pad columns hold the previous tile's
    #     tail; zeros only on the first tile of each batch element. ---
    if pad > 0:
        @pl.when(lt == 0)
        def _():
            xp_ref[:, :pad] = jnp.zeros((xp_ref.shape[0], pad), xp_ref.dtype)
            hp_ref[:, :pad] = jnp.zeros((hp_ref.shape[0], pad), hp_ref.dtype)

        @pl.when(lt > 0)
        def _():
            xp_ref[:, :pad] = xp_ref[:, tile_l:tile_l + pad]
            hp_ref[:, :pad] = hp_ref[:, tile_l:tile_l + pad]

    x = x_ref[0]                                      # (C_in, tile_l), input dtype
    xp_ref[:, pad:] = x.astype(cdt)

    # --- conv1: K dilated taps stacked into ONE MXU matmul (im2col) ---
    xcol = jnp.concatenate(
        [xp_ref[:, j * dilation: j * dilation + tile_l] for j in range(k)], axis=0)
    h1 = jnp.dot(w1_ref[...], xcol, preferred_element_type=jnp.float32)
    h1 = jnp.maximum(h1 + b1_ref[...], 0.0)           # bias + ReLU in f32
    # TODO(synk): training-mode dropout omitted (eval forward); would need
    # pltpu.prng_seed + pltpu.stateful_bernoulli masking here.

    hp_ref[:, pad:] = h1.astype(cdt)

    # --- conv2: same structure ---
    hcol = jnp.concatenate(
        [hp_ref[:, j * dilation: j * dilation + tile_l] for j in range(k)], axis=0)
    h2 = jnp.dot(w2_ref[...], hcol, preferred_element_type=jnp.float32)
    h2 = jnp.maximum(h2 + b2_ref[...], 0.0)

    # --- residual ---
    if has_downsample:
        res = jnp.dot(wd_ref[...], x.astype(cdt),
                      preferred_element_type=jnp.float32) + bd_ref[...]
    else:
        res = x.astype(jnp.float32)                   # identity: exact, no MXU pass

    o_ref[0] = jnp.maximum(h2 + res, 0.0).astype(o_ref.dtype)


def temporal_block(x, params, *, kernel_size, stride, dilation, padding,
                   dropout_prob=0.2, compute_dtype=jnp.bfloat16, max_tile_l=512):
    """Fused Pallas forward of TemporalBlock. x: (N, C_in, L) -> (N, C_out, L)."""
    del dropout_prob  # eval-mode forward (see TODO in kernel)
    assert x.ndim == 3, "expected (N, C, L)"
    n, c_in, l = x.shape
    # TODO(synk): stride != 1 not supported (TCN TemporalBlock always uses 1).
    assert stride == 1, "stride must be 1"
    # Residual add in the PyTorch module only type-checks under the causal
    # convention, i.e. conv+chomp preserves sequence length.
    assert padding == dilation * (kernel_size - 1), \
        "TemporalBlock requires padding == dilation * (kernel_size - 1)"

    w1 = _weight_norm(params["v1"], params["g1"])       # (C_out, C_in, K) f32
    w2 = _weight_norm(params["v2"], params["g2"])       # (C_out, C_out, K) f32
    c_out = w1.shape[0]
    b1 = params["b1"].reshape(c_out, 1).astype(jnp.float32)
    b2 = params["b2"].reshape(c_out, 1).astype(jnp.float32)

    has_downsample = params.get("w_down") is not None
    if not has_downsample:
        assert c_in == c_out, "identity residual requires C_in == C_out"

    # im2col weight layout (tap-major contraction): W2d[o, j*C + i] = w[o, i, j].
    w1_mat = jnp.transpose(w1, (0, 2, 1)).reshape(c_out, kernel_size * c_in)
    w2_mat = jnp.transpose(w2, (0, 2, 1)).reshape(c_out, kernel_size * c_out)
    w1_mat = w1_mat.astype(compute_dtype)
    w2_mat = w2_mat.astype(compute_dtype)

    # --- L tiling: lane-dense 128-multiple tiles, causal carry across tiles ---
    pad = padding
    tile_l = min(max_tile_l, _round_up(max(l, 1), 128))
    tile_l = max(tile_l, _round_up(max(pad, 1), 128))   # carry needs tile_l >= pad
    tile_l = _round_up(tile_l, 128)
    l_padded = _round_up(l, tile_l)
    n_lt = l_padded // tile_l
    x_in = jnp.pad(x, ((0, 0), (0, 0), (0, l_padded - l))) if l_padded != l else x

    kern = functools.partial(_temporal_block_kernel, k=kernel_size,
                             dilation=dilation, pad=pad, tile_l=tile_l,
                             has_downsample=has_downsample)

    in_specs = [
        pl.BlockSpec((1, c_in, tile_l), lambda b, t: (b, 0, t)),             # x
        pl.BlockSpec((c_out, kernel_size * c_in), lambda b, t: (0, 0)),      # w1
        pl.BlockSpec((c_out, 1), lambda b, t: (0, 0)),                       # b1
        pl.BlockSpec((c_out, kernel_size * c_out), lambda b, t: (0, 0)),     # w2
        pl.BlockSpec((c_out, 1), lambda b, t: (0, 0)),                       # b2
    ]
    args = [x_in, w1_mat, b1, w2_mat, b2]
    wd_elems = 0
    if has_downsample:
        wd = params["w_down"].reshape(c_out, c_in).astype(compute_dtype)
        bd = params["b_down"].reshape(c_out, 1).astype(jnp.float32)
        in_specs += [pl.BlockSpec((c_out, c_in), lambda b, t: (0, 0)),       # wd
                     pl.BlockSpec((c_out, 1), lambda b, t: (0, 0))]          # bd
        args += [wd, bd]
        wd_elems = c_out * c_in

    itemsize = jnp.dtype(x.dtype).itemsize
    w_itemsize = jnp.dtype(compute_dtype).itemsize
    flops = 2 * n * l_padded * kernel_size * (c_out * c_in + c_out * c_out)
    if has_downsample:
        flops += 2 * n * l_padded * c_out * c_in
    bytes_accessed = int((x_in.size + n * c_out * l_padded) * itemsize
                         + (w1_mat.size + w2_mat.size + wd_elems) * w_itemsize
                         + (b1.size + b2.size + c_out) * 4)

    # Explicit VMEM budget (double-buffered x/out blocks + weights + scratch),
    # with headroom; tile sizes keep this well inside v7x's 64 MiB.
    vmem_need = (2 * c_in * tile_l * itemsize
                 + 2 * c_out * tile_l * itemsize
                 + (w1_mat.size + w2_mat.size + wd_elems) * w_itemsize
                 + (b1.size + b2.size + c_out) * 4
                 + (c_in + c_out) * (pad + tile_l) * w_itemsize)
    vmem_limit = int(min(32 * 1024 * 1024, max(8 * 1024 * 1024, 4 * vmem_need)))

    y = pl.pallas_call(
        kern,
        out_shape=jax.ShapeDtypeStruct((n, c_out, l_padded), x.dtype),
        grid_spec=pltpu.PrefetchScalarGridSpec(
            num_scalar_prefetch=0,
            grid=(n, n_lt),
            in_specs=in_specs,
            out_specs=pl.BlockSpec((1, c_out, tile_l), lambda b, t: (b, 0, t)),
            scratch_shapes=[
                pltpu.VMEM((c_in, pad + tile_l), compute_dtype),   # padded x tile
                pltpu.VMEM((c_out, pad + tile_l), compute_dtype),  # padded h1 tile
            ],
        ),
        compiler_params=pltpu.CompilerParams(
            dimension_semantics=("parallel", "arbitrary"),
            vmem_limit_bytes=vmem_limit,
        ),
        cost_estimate=pl.CostEstimate(flops=int(flops), transcendentals=0,
                                      bytes_accessed=bytes_accessed),
    )(*args)

    return y[:, :, :l] if l_padded != l else y


# ---------------------------------------------------------------------------
# Pure-JAX reference (same math as the PyTorch module, eval mode).
# ---------------------------------------------------------------------------
def _ref_temporal_block(x, w1, b1, w2, b2, wd, bd, *, dilation, pad):
    hi = jax.lax.Precision.HIGHEST

    def causal_conv(h, w, b):
        hp = jnp.pad(h, ((0, 0), (0, 0), (pad, pad)))
        y = jax.lax.conv_general_dilated(
            hp, w, window_strides=(1,), padding="VALID",
            rhs_dilation=(dilation,),
            dimension_numbers=("NCH", "OIH", "NCH"), precision=hi)
        y = y + b[None, :, None]
        return y[:, :, :h.shape[2]]                      # chomp

    h1 = jax.nn.relu(causal_conv(x, w1, b1))
    h2 = jax.nn.relu(causal_conv(h1, w2, b2))
    res = jnp.einsum("oc,ncl->nol", wd, x, precision=hi) + bd[None, :, None]
    return jax.nn.relu(h2 + res)


if __name__ == "__main__":
    def make_params(key, c_in, c_out, k, with_down):
        ks = jax.random.split(key, 8)
        return dict(
            v1=0.01 * jax.random.normal(ks[0], (c_out, c_in, k), jnp.float32),
            g1=1.0 + 0.1 * jax.random.normal(ks[1], (c_out, 1, 1), jnp.float32),
            b1=0.1 * jax.random.normal(ks[2], (c_out,), jnp.float32),
            v2=0.01 * jax.random.normal(ks[3], (c_out, c_out, k), jnp.float32),
            g2=1.0 + 0.1 * jax.random.normal(ks[4], (c_out, 1, 1), jnp.float32),
            b2=0.1 * jax.random.normal(ks[5], (c_out,), jnp.float32),
            w_down=(0.01 * jax.random.normal(ks[6], (c_out, c_in, 1), jnp.float32)
                    if with_down else None),
            b_down=(0.1 * jax.random.normal(ks[7], (c_out,), jnp.float32)
                    if with_down else None),
        )

    def run_case(key, *, n, c_in, c_out, l, k, dilation, with_down,
                 compute_dtype, max_tile_l, atol, rtol):
        padding = dilation * (k - 1)
        kx, kp = jax.random.split(key)
        params = make_params(kp, c_in, c_out, k, with_down)
        x = jax.random.normal(kx, (n, c_in, l), jnp.float32)

        y = temporal_block(x, params, kernel_size=k, stride=1, dilation=dilation,
                           padding=padding, compute_dtype=compute_dtype,
                           max_tile_l=max_tile_l)
        y = jax.block_until_ready(y)

        w1n = _weight_norm(params["v1"], params["g1"])
        w2n = _weight_norm(params["v2"], params["g2"])
        if with_down:
            wd, bd = params["w_down"][:, :, 0], params["b_down"]
        else:
            wd = jnp.eye(c_out, dtype=jnp.float32)
            bd = jnp.zeros((c_out,), jnp.float32)
        y_ref = _ref_temporal_block(x, w1n, params["b1"], w2n, params["b2"],
                                    wd, bd, dilation=dilation, pad=padding)
        assert y.shape == y_ref.shape, (y.shape, y_ref.shape)
        err = float(jnp.max(jnp.abs(y - y_ref)))
        assert jnp.allclose(y, y_ref, atol=atol, rtol=rtol), f"max abs err {err}"

    root = jax.random.PRNGKey(0)
    k1, k2, k3 = jax.random.split(root, 3)

    # 1) downsample path (C_in != C_out), default bf16 MXU operands.
    run_case(k1, n=2, c_in=4, c_out=8, l=16, k=3, dilation=2, with_down=True,
             compute_dtype=jnp.bfloat16, max_tile_l=512, atol=5e-2, rtol=5e-2)
    # 2) identity-residual path (no downsample matmul), f32 operands.
    run_case(k2, n=2, c_in=8, c_out=8, l=16, k=3, dilation=1, with_down=False,
             compute_dtype=jnp.float32, max_tile_l=512, atol=1e-2, rtol=1e-2)
    # 3) multi-tile L (3 tiles of 128) exercising the causal carry across tiles.
    run_case(k3, n=2, c_in=4, c_out=8, l=300, k=3, dilation=4, with_down=True,
             compute_dtype=jnp.bfloat16, max_tile_l=128, atol=5e-2, rtol=5e-2)

    print("KERNEL_OK")
</pallas_src>

<mosaic_0001>
module attributes {stable_mosaic.version = 11 : i64} {
  func.func @_temporal_block_kernel(%arg0: i32, %arg1: i32, %arg2: memref<1x4x128xf32, #tpu.memory_space<vmem>>, %arg3: memref<8x12xbf16, #tpu.memory_space<vmem>>, %arg4: memref<8x1xf32, #tpu.memory_space<vmem>>, %arg5: memref<8x24xbf16, #tpu.memory_space<vmem>>, %arg6: memref<8x1xf32, #tpu.memory_space<vmem>>, %arg7: memref<8x4xbf16, #tpu.memory_space<vmem>>, %arg8: memref<8x1xf32, #tpu.memory_space<vmem>>, %arg9: memref<1x8x128xf32, #tpu.memory_space<vmem>>, %arg10: memref<4x132xbf16, #tpu.memory_space<vmem>>, %arg11: memref<8x132xbf16, #tpu.memory_space<vmem>>) attributes {dimension_semantics = [#tpu.dimension_semantics<parallel>, #tpu.dimension_semantics<arbitrary>], iteration_bounds = array<i64: 2, 1>, scalar_prefetch = 0 : i64, scratch_operands = 2 : i64, tpu.core_type = #tpu.core_type<tc>, window_params = [{transform_indices = @transform_0, window_bounds = array<i64: 1, 4, 128>}, {pipeline_mode = #tpu.pipeline_mode<synchronous>, transform_indices = @transform_1, window_bounds = array<i64: 8, 12>}, {pipeline_mode = #tpu.pipeline_mode<synchronous>, transform_indices = @transform_2, window_bounds = array<i64: 8, 1>}, {pipeline_mode = #tpu.pipeline_mode<synchronous>, transform_indices = @transform_3, window_bounds = array<i64: 8, 24>}, {pipeline_mode = #tpu.pipeline_mode<synchronous>, transform_indices = @transform_4, window_bounds = array<i64: 8, 1>}, {pipeline_mode = #tpu.pipeline_mode<synchronous>, transform_indices = @transform_5, window_bounds = array<i64: 8, 4>}, {pipeline_mode = #tpu.pipeline_mode<synchronous>, transform_indices = @transform_6, window_bounds = array<i64: 8, 1>}, {transform_indices = @transform_7, window_bounds = array<i64: 1, 8, 128>}]} {
    %c0_i32 = arith.constant 0 : i32
    %0 = arith.cmpi eq, %arg1, %c0_i32 : i32
    %1 = arith.extui %0 : i1 to i32
    %c0_i32_0 = arith.constant 0 : i32
    %2 = arith.cmpi ne, %1, %c0_i32_0 : i32
    scf.if %2 {
      %cst_39 = arith.constant 0.000000e+00 : bf16
      %46 = vector.broadcast %cst_39 : bf16 to vector<4x4xbf16>
      %c0_40 = arith.constant 0 : index
      %c0_41 = arith.constant 0 : index
      %47 = vector.load %arg10[%c0_40, %c0_41] : memref<4x132xbf16, #tpu.memory_space<vmem>>, vector<4x4xbf16>
      tpu.vector_store %arg10[%c0_40, %c0_41], %46 {strides = array<i32>} : memref<4x132xbf16, #tpu.memory_space<vmem>>, vector<4x4xbf16>,
      %cst_42 = arith.constant 0.000000e+00 : bf16
      %48 = vector.broadcast %cst_42 : bf16 to vector<8x4xbf16>
      %c0_43 = arith.constant 0 : index
      %c0_44 = arith.constant 0 : index
      %49 = vector.load %arg11[%c0_43, %c0_44] : memref<8x132xbf16, #tpu.memory_space<vmem>>, vector<8x4xbf16>
      tpu.vector_store %arg11[%c0_43, %c0_44], %48 {strides = array<i32>} : memref<8x132xbf16, #tpu.memory_space<vmem>>, vector<8x4xbf16>,
    } else {
    }
    %c0_i32_1 = arith.constant 0 : i32
    %3 = arith.cmpi sgt, %arg1, %c0_i32_1 : i32
    %4 = arith.extui %3 : i1 to i32
    %c0_i32_2 = arith.constant 0 : i32
    %5 = arith.cmpi ne, %4, %c0_i32_2 : i32
    scf.if %5 {
      %c0_39 = arith.constant 0 : index
      %c128 = arith.constant 128 : index
      %46 = vector.load %arg10[%c0_39, %c128] : memref<4x132xbf16, #tpu.memory_space<vmem>>, vector<4x4xbf16>
      %c0_40 = arith.constant 0 : index
      %c0_41 = arith.constant 0 : index
      %47 = vector.load %arg10[%c0_40, %c0_41] : memref<4x132xbf16, #tpu.memory_space<vmem>>, vector<4x4xbf16>
      tpu.vector_store %arg10[%c0_40, %c0_41], %46 {strides = array<i32>} : memref<4x132xbf16, #tpu.memory_space<vmem>>, vector<4x4xbf16>,
      %c0_42 = arith.constant 0 : index
      %c128_43 = arith.constant 128 : index
      %48 = vector.load %arg11[%c0_42, %c128_43] : memref<8x132xbf16, #tpu.memory_space<vmem>>, vector<8x4xbf16>
      %c0_44 = arith.constant 0 : index
      %c0_45 = arith.constant 0 : index
      %49 = vector.load %arg11[%c0_44, %c0_45] : memref<8x132xbf16, #tpu.memory_space<vmem>>, vector<8x4xbf16>
      tpu.vector_store %arg11[%c0_44, %c0_45], %48 {strides = array<i32>} : memref<8x132xbf16, #tpu.memory_space<vmem>>, vector<8x4xbf16>,
    } else {
    }
    %c0 = arith.constant 0 : index
    %c0_3 = arith.constant 0 : index
    %c0_4 = arith.constant 0 : index
    %6 = vector.load %arg2[%c0, %c0_3, %c0_4] : memref<1x4x128xf32, #tpu.memory_space<vmem>>, vector<1x4x128xf32>
    %7 = vector.shape_cast %6 : vector<1x4x128xf32> to vector<4x128xf32>
    %8 = arith.truncf %7 : vector<4x128xf32> to vector<4x128xbf16>
    %c0_5 = arith.constant 0 : index
    %c4 = arith.constant 4 : index
    %9 = vector.load %arg10[%c0_5, %c4] : memref<4x132xbf16, #tpu.memory_space<vmem>>, vector<4x128xbf16>
    tpu.vector_store %arg10[%c0_5, %c4], %8 {strides = array<i32>} : memref<4x132xbf16, #tpu.memory_space<vmem>>, vector<4x128xbf16>,
    %c0_6 = arith.constant 0 : index
    %c0_7 = arith.constant 0 : index
    %10 = vector.load %arg10[%c0_6, %c0_7] : memref<4x132xbf16, #tpu.memory_space<vmem>>, vector<4x128xbf16>
    %c0_8 = arith.constant 0 : index
    %c2 = arith.constant 2 : index
    %11 = vector.load %arg10[%c0_8, %c2] : memref<4x132xbf16, #tpu.memory_space<vmem>>, vector<4x128xbf16>
    %c0_9 = arith.constant 0 : index
    %c4_10 = arith.constant 4 : index
    %12 = vector.load %arg10[%c0_9, %c4_10] : memref<4x132xbf16, #tpu.memory_space<vmem>>, vector<4x128xbf16>
    %13 = tpu.concatenate %10, %11, %12 in 0 : vector<4x128xbf16>, vector<4x128xbf16>, vector<4x128xbf16> -> vector<12x128xbf16>
    %c0_11 = arith.constant 0 : index
    %c0_12 = arith.constant 0 : index
    %14 = vector.load %arg3[%c0_11, %c0_12] : memref<8x12xbf16, #tpu.memory_space<vmem>>, vector<8x12xbf16>
    %cst = arith.constant dense<0.000000e+00> : vector<8x128xf32>
    %15 = tpu.matmul %14, %13, %cst {dimension_numbers = #tpu.dot_dimension_numbers<[1], [0], [0], [1], [0, 0, 1, 1], [], []>} : vector<8x12xbf16>, vector<12x128xbf16>, vector<8x128xf32> -> vector<8x128xf32>
    %c0_13 = arith.constant 0 : index
    %c0_14 = arith.constant 0 : index
    %16 = vector.load %arg4[%c0_13, %c0_14] : memref<8x1xf32, #tpu.memory_space<vmem>>, vector<8x1xf32>
    %17 = vector.broadcast %16 : vector<8x1xf32> to vector<8x128xf32>
    %18 = arith.addf %15, %17 : vector<8x128xf32>
    %cst_15 = arith.constant 0.000000e+00 : f32
    %19 = vector.broadcast %cst_15 : f32 to vector<8x128xf32>
    %20 = arith.maximumf %18, %19 : vector<8x128xf32>
    %21 = arith.truncf %20 : vector<8x128xf32> to vector<8x128xbf16>
    %c0_16 = arith.constant 0 : index
    %c4_17 = arith.constant 4 : index
    %22 = vector.load %arg11[%c0_16, %c4_17] : memref<8x132xbf16, #tpu.memory_space<vmem>>, vector<8x128xbf16>
    tpu.vector_store %arg11[%c0_16, %c4_17], %21 {strides = array<i32>} : memref<8x132xbf16, #tpu.memory_space<vmem>>, vector<8x128xbf16>,
    %c0_18 = arith.constant 0 : index
    %c0_19 = arith.constant 0 : index
    %23 = vector.load %arg11[%c0_18, %c0_19] : memref<8x132xbf16, #tpu.memory_space<vmem>>, vector<8x128xbf16>
    %c0_20 = arith.constant 0 : index
    %c2_21 = arith.constant 2 : index
    %24 = vector.load %arg11[%c0_20, %c2_21] : memref<8x132xbf16, #tpu.memory_space<vmem>>, vector<8x128xbf16>
    %c0_22 = arith.constant 0 : index
    %c4_23 = arith.constant 4 : index
    %25 = vector.load %arg11[%c0_22, %c4_23] : memref<8x132xbf16, #tpu.memory_space<vmem>>, vector<8x128xbf16>
    %26 = tpu.concatenate %23, %24, %25 in 0 : vector<8x128xbf16>, vector<8x128xbf16>, vector<8x128xbf16> -> vector<24x128xbf16>
    %c0_24 = arith.constant 0 : index
    %c0_25 = arith.constant 0 : index
    %27 = vector.load %arg5[%c0_24, %c0_25] : memref<8x24xbf16, #tpu.memory_space<vmem>>, vector<8x24xbf16>
    %cst_26 = arith.constant dense<0.000000e+00> : vector<8x128xf32>
    %28 = tpu.matmul %27, %26, %cst_26 {dimension_numbers = #tpu.dot_dimension_numbers<[1], [0], [0], [1], [0, 0, 1, 1], [], []>} : vector<8x24xbf16>, vector<24x128xbf16>, vector<8x128xf32> -> vector<8x128xf32>
    %c0_27 = arith.constant 0 : index
    %c0_28 = arith.constant 0 : index
    %29 = vector.load %arg6[%c0_27, %c0_28] : memref<8x1xf32, #tpu.memory_space<vmem>>, vector<8x1xf32>
    %30 = vector.broadcast %29 : vector<8x1xf32> to vector<8x128xf32>
    %31 = arith.addf %28, %30 : vector<8x128xf32>
    %cst_29 = arith.constant 0.000000e+00 : f32
    %32 = vector.broadcast %cst_29 : f32 to vector<8x128xf32>
    %33 = arith.maximumf %31, %32 : vector<8x128xf32>
    %c0_30 = arith.constant 0 : index
    %c0_31 = arith.constant 0 : index
    %34 = vector.load %arg7[%c0_30, %c0_31] : memref<8x4xbf16, #tpu.memory_space<vmem>>, vector<8x4xbf16>
    %35 = arith.truncf %7 : vector<4x128xf32> to vector<4x128xbf16>
    %cst_32 = arith.constant dense<0.000000e+00> : vector<8x128xf32>
    %36 = tpu.matmul %34, %35, %cst_32 {dimension_numbers = #tpu.dot_dimension_numbers<[1], [0], [0], [1], [0, 0, 1, 1], [], []>} : vector<8x4xbf16>, vector<4x128xbf16>, vector<8x128xf32> -> vector<8x128xf32>
    %c0_33 = arith.constant 0 : index
    %c0_34 = arith.constant 0 : index
    %37 = vector.load %arg8[%c0_33, %c0_34] : memref<8x1xf32, #tpu.memory_space<vmem>>, vector<8x1xf32>
    %38 = vector.broadcast %37 : vector<8x1xf32> to vector<8x128xf32>
    %39 = arith.addf %36, %38 : vector<8x128xf32>
    %40 = arith.addf %33, %39 : vector<8x128xf32>
    %cst_35 = arith.constant 0.000000e+00 : f32
    %41 = vector.broadcast %cst_35 : f32 to vector<8x128xf32>
    %42 = arith.maximumf %40, %41 : vector<8x128xf32>
    %c0_36 = arith.constant 0 : index
    %c0_37 = arith.constant 0 : index
    %c0_38 = arith.constant 0 : index
    %43 = vector.load %arg9[%c0_36, %c0_37, %c0_38] : memref<1x8x128xf32, #tpu.memory_space<vmem>>, vector<1x8x128xf32>
    %44 = vector.shape_cast %43 : vector<1x8x128xf32> to vector<8x128xf32>
    %45 = vector.shape_cast %42 : vector<8x128xf32> to vector<1x8x128xf32>
    tpu.vector_store %arg9[%c0_36, %c0_37, %c0_38], %45 {strides = array<i32>} : memref<1x8x128xf32, #tpu.memory_space<vmem>>, vector<1x8x128xf32>,
    return
  }
  func.func @transform_0(%arg0: i32, %arg1: i32) -> (i32, i32, i32) {
    %c0_i32 = arith.constant 0 : i32
    %c0_i32_0 = arith.constant 0 : i32
    return %arg0, %c0_i32, %arg1 : i32, i32, i32
  }
  func.func @transform_1(%arg0: i32, %arg1: i32) -> (i32, i32) {
    %c0_i32 = arith.constant 0 : i32
    %c0_i32_0 = arith.constant 0 : i32
    %c0_i32_1 = arith.constant 0 : i32
    return %c0_i32, %c0_i32_0 : i32, i32
  }
  func.func @transform_2(%arg0: i32, %arg1: i32) -> (i32, i32) {
    %c0_i32 = arith.constant 0 : i32
    %c0_i32_0 = arith.constant 0 : i32
    %c0_i32_1 = arith.constant 0 : i32
    return %c0_i32, %c0_i32_0 : i32, i32
  }
  func.func @transform_3(%arg0: i32, %arg1: i32) -> (i32, i32) {
    %c0_i32 = arith.constant 0 : i32
    %c0_i32_0 = arith.constant 0 : i32
    %c0_i32_1 = arith.constant 0 : i32
    return %c0_i32, %c0_i32_0 : i32, i32
  }
  func.func @transform_4(%arg0: i32, %arg1: i32) -> (i32, i32) {
    %c0_i32 = arith.constant 0 : i32
    %c0_i32_0 = arith.constant 0 : i32
    %c0_i32_1 = arith.constant 0 : i32
    return %c0_i32, %c0_i32_0 : i32, i32
  }
  func.func @transform_5(%arg0: i32, %arg1: i32) -> (i32, i32) {
    %c0_i32 = arith.constant 0 : i32
    %c0_i32_0 = arith.constant 0 : i32
    %c0_i32_1 = arith.constant 0 : i32
    return %c0_i32, %c0_i32_0 : i32, i32
  }
  func.func @transform_6(%arg0: i32, %arg1: i32) -> (i32, i32) {
    %c0_i32 = arith.constant 0 : i32
    %c0_i32_0 = arith.constant 0 : i32
    %c0_i32_1 = arith.constant 0 : i32
    return %c0_i32, %c0_i32_0 : i32, i32
  }
  func.func @transform_7(%arg0: i32, %arg1: i32) -> (i32, i32, i32) {
    %c0_i32 = arith.constant 0 : i32
    %c0_i32_0 = arith.constant 0 : i32
    return %arg0, %c0_i32, %arg1 : i32, i32, i32
  }
}

</mosaic_0001>

<llo_original>
// kernel: tpu_custom_call.1
$region0: #{tpu_custom_call.1}
  #allocation0 [shape = 'u32[]', space=smem, size = 0x4, offset = 0x4, fixed_abs, tag = 'smem constant byte address 0x4 - core index']
  #allocation1 [shape = 'u32[144,128]{1,0:T(1,128)}', space=vmem, size = 0x12000, scoped, tag = 'internal scratch']
  #allocation2 [shape = 'bf16[4,132]{1,0:T(4,128)(2,1)}', space=vmem, size = 0x800, scoped, tag = 'scratch operand']
  #allocation3 [shape = 'bf16[8,132]{1,0:T(8,128)(2,1)}', space=vmem, size = 0x1000, scoped, tag = 'scratch operand']
  %s0 = inlined_call_operand.vmem [shape: f32[2,4,128], index: 0, kind: input, shape index: {}]
  %s1 = inlined_call_operand.vmem [shape: bf16[8,12], index: 1, kind: input, shape index: {}]
  %s2 = inlined_call_operand.vmem [shape: f32[8,1], index: 2, kind: input, shape index: {}]
  %s3 = inlined_call_operand.vmem [shape: bf16[8,24], index: 3, kind: input, shape index: {}]
  %s4 = inlined_call_operand.vmem [shape: f32[8,1], index: 4, kind: input, shape index: {}]
  %s5 = inlined_call_operand.vmem [shape: bf16[8,4], index: 5, kind: input, shape index: {}]
  %s6 = inlined_call_operand.vmem [shape: f32[8,1], index: 6, kind: input, shape index: {}]
  %s7 = inlined_call_operand.hbm [shape: f32[2,8,128], index: 7, kind: output, shape index: {}]
  %s8 = sld [smem:[#allocation0]]
  $region69: #{tpu_custom_call.1} parent=0
    _
  %s10 = ssub.s32 1, %s8
  %s11 = scalar_select 0, %s10, %s8
  $region1: #{tpu_custom_call.1} parent=0
    #allocation4 [shape = 'u8[8192]{0}', space=vmem, size = 0x2000, scoped, tag = 'output window, operand 0']
    #allocation5 [shape = 's32[2]{0}', space=sflag, size = 0x8, scoped, tag = 'scoped memory for tpu_custom_call.1']
    %12 = vsyncpa [#allocation5], 0
    %s13 = scalar_lea.sflag [#allocation5], 1
    %14 = vsyncpa %s13, 0
    loop: start=0, step=1, limit=4
    $region2: #{tpu_custom_call.1} parent=1 // loop_pre_header
      _
    $region3: #{tpu_custom_call.1} parent=1 // loop_header
      %s16 = sphi 0, %s20
      %p17 = scmp.ge.s32.totalorder %s16, 4
      %s23 = sphi 0, %s35
      %s24 = sphi 0, %s31
      %s25 = sphi 0, %s23
      %s26 = sphi 0, %s24
      %s27 = sphi 0, %s25
      %s28 = sphi 0, %s26
      %s40 = sphi 0, %s42
      %s43 = sphi 0, %s40
      %s44 = sphi 0, %s43
      %s60 = sphi 0, %s44
      %s64 = sphi 0, %s64
      %s66 = sphi 0, %s64
      %s67 = sphi 0, %s66
      %s81 = sphi 0, %s67
      %s85 = sphi 0, %s85
      %s87 = sphi 0, %s85
      %s88 = sphi 0, %s87
      %s102 = sphi 0, %s88
      %s106 = sphi 0, %s106
      %s108 = sphi 0, %s106
      %s109 = sphi 0, %s108
      %s123 = sphi 0, %s109
      %s127 = sphi 0, %s127
      %s129 = sphi 0, %s127
      %s130 = sphi 0, %s129
      %s144 = sphi 0, %s130
      %s148 = sphi 0, %s148
      %s150 = sphi 0, %s148
      %s151 = sphi 0, %s150
      %s165 = sphi 0, %s151
      %s169 = sphi 0, %s169
      %s171 = sphi 0, %s169
      %s172 = sphi 0, %s171
      %s186 = sphi 0, %s172
      %s194 = sphi 0, %s196
      %s197 = sphi 0, %s194
      %s198 = sphi 0, %s197
      %s214 = sphi 0, %s198
    $region4: #{tpu_custom_call.1} parent=1 // loop_header_branch
      %19 = sbr.rel (%p17) target = $region8
    $region5: #{tpu_custom_call.1} parent=1 // loop_body
      %s21 = ssub.s32 %s16, 1
      %s22 = ssub.s32 %s16, 2
      %s29 = sadd.s32 1, %s24
      %p30 = scmp.ge.s32.totalorder %s29, 1
      %s31 = scalar_select %p30, 0, %s29
      %s32 = sadd.s32 1, %s23
      %s33 = scalar_select %p30, %s32, %s23
      %p34 = scmp.ge.s32.totalorder %s33, 2
      %s35 = scalar_select %p34, 0, %s33
      %s36 = ssub.s32 %s23, %s35
      %s37 = ssub.s32 %s24, %s31
      %s38 = sor.u32 %s36, %s37
      %p39 = scmp.eq.s32.totalorder %s38, 0
      %s41 = sadd.s32 %s40, 1
      %s42 = scalar_select %p39, %s40, %s41
      %p45 = pneg %p39
      %p46 = scmp.eq.s32.totalorder %s16, 1
      %p47 = por %p45, %p46
      %p48 = scmp.ne.s32.totalorder %s40, %s43
      %p49 = scmp.eq.s32.totalorder %s16, 0
      %p50 = por %p48, %p49
      %p51 = scmp.ne.s32.totalorder %s40, %s43
      %p52 = scmp.eq.s32.totalorder %s21, 1
      %p53 = por %p51, %p52
      %p54 = scmp.ne.s32.totalorder %s43, %s44
      %p55 = scmp.eq.s32.totalorder %s21, 0
      %p56 = por %p54, %p55
      %p57 = scmp.ne.s32.totalorder %s43, %s44
      %p58 = scmp.eq.s32.totalorder %s22, 1
      %p59 = por %p57, %p58
      %p61 = scmp.ne.s32.totalorder %s44, %s60
      %p62 = scmp.eq.s32.totalorder %s22, 0
      %p63 = por %p61, %p62
      %s65 = sadd.s32 %s64, 1
      %p68 = scmp.eq.s32.totalorder %s16, 1
      %p69 = scmp.ne.s32.totalorder %s64, %s66
      %p70 = scmp.eq.s32.totalorder %s16, 0
      %p71 = por %p69, %p70
      %p72 = scmp.ne.s32.totalorder %s64, %s66
      %p73 = scmp.eq.s32.totalorder %s21, 1
      %p74 = por %p72, %p73
      %p75 = scmp.ne.s32.totalorder %s66, %s67
      %p76 = scmp.eq.s32.totalorder %s21, 0
      %p77 = por %p75, %p76
      %p78 = scmp.ne.s32.totalorder %s66, %s67
      %p79 = scmp.eq.s32.totalorder %s22, 1
      %p80 = por %p78, %p79
      %p82 = scmp.ne.s32.totalorder %s67, %s81
      %p83 = scmp.eq.s32.totalorder %s22, 0
      %p84 = por %p82, %p83
      %s86 = sadd.s32 %s85, 1
      %p89 = scmp.eq.s32.totalorder %s16, 1
      %p90 = scmp.ne.s32.totalorder %s85, %s87
      %p91 = scmp.eq.s32.totalorder %s16, 0
      %p92 = por %p90, %p91
      %p93 = scmp.ne.s32.totalorder %s85, %s87
      %p94 = scmp.eq.s32.totalorder %s21, 1
      %p95 = por %p93, %p94
      %p96 = scmp.ne.s32.totalorder %s87, %s88
      %p97 = scmp.eq.s32.totalorder %s21, 0
      %p98 = por %p96, %p97
      %p99 = scmp.ne.s32.totalorder %s87, %s88
      %p100 = scmp.eq.s32.totalorder %s22, 1
      %p101 = por %p99, %p100
      %p103 = scmp.ne.s32.totalorder %s88, %s102
      %p104 = scmp.eq.s32.totalorder %s22, 0
      %p105 = por %p103, %p104
      %s107 = sadd.s32 %s106, 1
      %p110 = scmp.eq.s32.totalorder %s16, 1
      %p111 = scmp.ne.s32.totalorder %s106, %s108
      %p112 = scmp.eq.s32.totalorder %s16, 0
      %p113 = por %p111, %p112
      %p114 = scmp.ne.s32.totalorder %s106, %s108
      %p115 = scmp.eq.s32.totalorder %s21, 1
      %p116 = por %p114, %p115
      %p117 = scmp.ne.s32.totalorder %s108, %s109
      %p118 = scmp.eq.s32.totalorder %s21, 0
      %p119 = por %p117, %p118
      %p120 = scmp.ne.s32.totalorder %s108, %s109
      %p121 = scmp.eq.s32.totalorder %s22, 1
      %p122 = por %p120, %p121
      %p124 = scmp.ne.s32.totalorder %s109, %s123
      %p125 = scmp.eq.s32.totalorder %s22, 0
      %p126 = por %p124, %p125
      %s128 = sadd.s32 %s127, 1
      %p131 = scmp.eq.s32.totalorder %s16, 1
      %p132 = scmp.ne.s32.totalorder %s127, %s129
      %p133 = scmp.eq.s32.totalorder %s16, 0
      %p134 = por %p132, %p133
      %p135 = scmp.ne.s32.totalorder %s127, %s129
      %p136 = scmp.eq.s32.totalorder %s21, 1
      %p137 = por %p135, %p136
      %p138 = scmp.ne.s32.totalorder %s129, %s130
      %p139 = scmp.eq.s32.totalorder %s21, 0
      %p140 = por %p138, %p139
      %p141 = scmp.ne.s32.totalorder %s129, %s130
      %p142 = scmp.eq.s32.totalorder %s22, 1
      %p143 = por %p141, %p142
      %p145 = scmp.ne.s32.totalorder %s130, %s144
      %p146 = scmp.eq.s32.totalorder %s22, 0
      %p147 = por %p145, %p146
      %s149 = sadd.s32 %s148, 1
      %p152 = scmp.eq.s32.totalorder %s16, 1
      %p153 = scmp.ne.s32.totalorder %s148, %s150
      %p154 = scmp.eq.s32.totalorder %s16, 0
      %p155 = por %p153, %p154
      %p156 = scmp.ne.s32.totalorder %s148, %s150
      %p157 = scmp.eq.s32.totalorder %s21, 1
      %p158 = por %p156, %p157
      %p159 = scmp.ne.s32.totalorder %s150, %s151
      %p160 = scmp.eq.s32.totalorder %s21, 0
      %p161 = por %p159, %p160
      %p162 = scmp.ne.s32.totalorder %s150, %s151
      %p163 = scmp.eq.s32.totalorder %s22, 1
      %p164 = por %p162, %p163
      %p166 = scmp.ne.s32.totalorder %s151, %s165
      %p167 = scmp.eq.s32.totalorder %s22, 0
      %p168 = por %p166, %p167
      %s170 = sadd.s32 %s169, 1
      %p173 = scmp.eq.s32.totalorder %s16, 1
      %p174 = scmp.ne.s32.totalorder %s169, %s171
      %p175 = scmp.eq.s32.totalorder %s16, 0
      %p176 = por %p174, %p175
      %p177 = scmp.ne.s32.totalorder %s169, %s171
      %p178 = scmp.eq.s32.totalorder %s21, 1
      %p179 = por %p177, %p178
      %p180 = scmp.ne.s32.totalorder %s171, %s172
      %p181 = scmp.eq.s32.totalorder %s21, 0
      %p182 = por %p180, %p181
      %p183 = scmp.ne.s32.totalorder %s171, %s172
      %p184 = scmp.eq.s32.totalorder %s22, 1
      %p185 = por %p183, %p184
      %p187 = scmp.ne.s32.totalorder %s172, %s186
      %p188 = scmp.eq.s32.totalorder %s22, 0
      %p189 = por %p187, %p188
      %s190 = ssub.s32 %s23, %s35
      %s191 = ssub.s32 %s24, %s31
      %s192 = sor.u32 %s190, %s191
      %p193 = scmp.eq.s32.totalorder %s192, 0
      %s195 = sadd.s32 %s194, 1
      %s196 = scalar_select %p193, %s194, %s195
      %p199 = pneg %p193
      %p200 = scmp.eq.s32.totalorder %s16, 1
      %p201 = por %p199, %p200
      %p202 = scmp.ne.s32.totalorder %s194, %s197
      %p203 = scmp.eq.s32.totalorder %s16, 0
      %p204 = por %p202, %p203
      %p205 = scmp.ne.s32.totalorder %s194, %s197
      %p206 = scmp.eq.s32.totalorder %s21, 1
      %p207 = por %p205, %p206
      %p208 = scmp.ne.s32.totalorder %s197, %s198
      %p209 = scmp.eq.s32.totalorder %s21, 0
      %p210 = por %p208, %p209
      %p211 = scmp.ne.s32.totalorder %s197, %s198
      %p212 = scmp.eq.s32.totalorder %s22, 1
      %p213 = por %p211, %p212
      %p215 = scmp.ne.s32.totalorder %s198, %s214
      %p216 = scmp.eq.s32.totalorder %s22, 0
      %p217 = por %p215, %p216
      %p218 = scmp.le.s32.totalorder 1, %s16
      %p219 = scmp.lt.s32.totalorder %s16, 3
      %p220 = pnand %p218, %p219
      %p221 = pneg %p220
      // Predicated region
      $region9: #{tpu_custom_call.1} parent=5 // pred_check
        _
      $region10: #{tpu_custom_call.1} parent=5 // pred_check_branch
        %223 = sbr.rel (%p220) target = $region12
      $region11: #{tpu_custom_call.1} parent=5 // pred_region
        %s224 = ssub.s32 %s16, 1
        // Predicated region
        $region13: #{tpu_custom_call.1} parent=11 // pred_check
          %p225 = pneg %p77
        $region14: #{tpu_custom_call.1} parent=11 // pred_check_branch
          %227 = sbr.rel (%p225) target = $region16
        $region15: #{tpu_custom_call.1} parent=11 // pred_region
          _
        $region16: #{tpu_custom_call.1} parent=11 // pred_fallthru
          _
        // Predicated region
        $region17: #{tpu_custom_call.1} parent=11 // pred_check
          %p228 = pneg %p98
        $region18: #{tpu_custom_call.1} parent=11 // pred_check_branch
          %230 = sbr.rel (%p228) target = $region20
        $region19: #{tpu_custom_call.1} parent=11 // pred_region
          _
        $region20: #{tpu_custom_call.1} parent=11 // pred_fallthru
          _
        // Predicated region
        $region21: #{tpu_custom_call.1} parent=11 // pred_check
          %p231 = pneg %p119
        $region22: #{tpu_custom_call.1} parent=11 // pred_check_branch
          %233 = sbr.rel (%p231) target = $region24
        $region23: #{tpu_custom_call.1} parent=11 // pred_region
          _
        $region24: #{tpu_custom_call.1} parent=11 // pred_fallthru
          _
        // Predicated region
        $region25: #{tpu_custom_call.1} parent=11 // pred_check
          %p234 = pneg %p140
        $region26: #{tpu_custom_call.1} parent=11 // pred_check_branch
          %236 = sbr.rel (%p234) target = $region28
        $region27: #{tpu_custom_call.1} parent=11 // pred_region
          _
        $region28: #{tpu_custom_call.1} parent=11 // pred_fallthru
          _
        // Predicated region
        $region29: #{tpu_custom_call.1} parent=11 // pred_check
          %p237 = pneg %p161
        $region30: #{tpu_custom_call.1} parent=11 // pred_check_branch
          %239 = sbr.rel (%p237) target = $region32
        $region31: #{tpu_custom_call.1} parent=11 // pred_region
          _
        $region32: #{tpu_custom_call.1} parent=11 // pred_fallthru
          _
        // Predicated region
        $region33: #{tpu_custom_call.1} parent=11 // pred_check
          %p240 = pneg %p182
        $region34: #{tpu_custom_call.1} parent=11 // pred_check_branch
          %242 = sbr.rel (%p240) target = $region36
        $region35: #{tpu_custom_call.1} parent=11 // pred_region
          _
        $region36: #{tpu_custom_call.1} parent=11 // pred_fallthru
          _
      $region12: #{tpu_custom_call.1} parent=5 // pred_fallthru
        _
      %p243 = scmp.lt.s32.totalorder %s16, 2
      // Predicated region
      $region37: #{tpu_custom_call.1} parent=5 // pred_check
        %p244 = pneg %p243
      $region38: #{tpu_custom_call.1} parent=5 // pred_check_branch
        %246 = sbr.rel (%p244) target = $region40
      $region39: #{tpu_custom_call.1} parent=5 // pred_region
        // Predicated region
        $region41: #{tpu_custom_call.1} parent=39 // pred_check
          %p247 = pneg %p50
        $region42: #{tpu_custom_call.1} parent=39 // pred_check_branch
          %249 = sbr.rel (%p247) target = $region44
        $region43: #{tpu_custom_call.1} parent=39 // pred_region
          %p250 = scmp.lt.s32.totalorder %s23, 1
          %s251 = scalar_select %p250, %s23, 1
          %p252 = scmp.lt.s32.totalorder %s24, 0
          %s253 = scalar_select %p252, %s24, 0
          %s254 = sadd.s32 %s253, %s251
          %s255 = smul.addr %s254, 4
          %s256 = scalar_lea.vmem %s0, %s255
        $region44: #{tpu_custom_call.1} parent=39 // pred_fallthru
          _
      $region40: #{tpu_custom_call.1} parent=5 // pred_fallthru
        _
      %p257 = scmp.le.s32.totalorder 1, %s16
      %p258 = scmp.lt.s32.totalorder %s16, 3
      %p259 = pnand %p257, %p258
      %p260 = pneg %p259
      // Predicated region
      $region45: #{tpu_custom_call.1} parent=5 // pred_check
        _
      $region46: #{tpu_custom_call.1} parent=5 // pred_check_branch
        %262 = sbr.rel (%p259) target = $region48
      $region47: #{tpu_custom_call.1} parent=5 // pred_region
        %s263 = ssub.s32 %s16, 1
        %p264 = scmp.lt.s32.totalorder %s25, 1
        %s265 = scalar_select %p264, %s25, 1
        %p266 = scmp.lt.s32.totalorder %s26, 0
        %s267 = scalar_select %p266, %s26, 0
        %s268 = sadd.s32 %s267, %s265
        %s269 = smul.addr %s268, 4
        %s270 = scalar_lea.vmem %s0, %s269
        %p271 = pneg %p56
        %p272 = pneg %p53
        %p273 = pneg %p77
        %p274 = pneg %p74
        %p275 = pneg %p98
        %p276 = pneg %p95
        %p277 = pneg %p119
        %p278 = pneg %p116
        %p279 = pneg %p140
        %p280 = pneg %p137
        %p281 = pneg %p161
        %p282 = pneg %p158
        %p283 = pneg %p182
        %p284 = pneg %p179
        %p285 = pneg %p210
        %p286 = pneg %p207
        %s287 = sand.u32 %s197, 1
        %s288 = scalar_lea.sflag [#allocation5], %s287
        %s289 = sand.u32 %s197, 1
        %s290 = smul.addr %s289, 8
        %s291 = scalar_lea.vmem [#allocation4], %s290
        %p292 = scmp.lt.s32.totalorder %s25, 1
        %s293 = scalar_select %p292, %s25, 1
        %p294 = scmp.lt.s32.totalorder %s26, 0
        %s295 = scalar_select %p294, %s26, 0
        %s296 = sadd.s32 %s295, %s293
        %s297 = smul.addr %s296, 4
        %s298 = scalar_lea.vmem %s0, %s297
        %p300 = scmp.eq.s32.totalorder %s26, 0
        // Predicated region
        $region49: #{tpu_custom_call.1} parent=47 // pred_check
          %p301 = pneg %p300
        $region50: #{tpu_custom_call.1} parent=47 // pred_check_branch
          %303 = sbr.rel (%p301) target = $region52
        $region51: #{tpu_custom_call.1} parent=47 // pred_region
          %vm304 = vcmask 25600
          %305 = vst.msk [vmem:[#allocation2] sm:$0x3] %vm304, 0
          %vm306 = vcmask 27648
          %307 = vst.msk [vmem:[#allocation3] sm:$0xf] %vm306, 0
        $region52: #{tpu_custom_call.1} parent=47 // pred_fallthru
          _
        %p308 = scmp.gt.s32.totalorder %s26, 0
        // Predicated region
        $region53: #{tpu_custom_call.1} parent=47 // pred_check
          %p309 = pneg %p308
        $region54: #{tpu_custom_call.1} parent=47 // pred_check_branch
          %311 = sbr.rel (%p309) target = $region56
        $region55: #{tpu_custom_call.1} parent=47 // pred_region
          %v312 = vld [vmem:[#allocation2 + $0x2] sm:$0x3]
          %vm313 = vcmask 25600
          %314 = vst.msk [vmem:[#allocation2] sm:$0x3] %vm313, %v312
          %v315 = vld [vmem:[#allocation3 + $0x4] sm:$0xf]
          %vm316 = vcmask 27648
          %317 = vst.msk [vmem:[#allocation3] sm:$0xf] %vm316, %v315
        $region56: #{tpu_custom_call.1} parent=47 // pred_fallthru
          _
        %v318 = vld [vmem:[%s298] sm:$0xf]
        %v319 = vpack.c.bf16 %v318, %v318
        %v322 = vunpack.c.l.s4 1983009808
        %v323 = vunpack.c.0.s8 %v322
        %v324 = vlaneseq
        %v325 = vshrl.u32 %v324, 7
        %v326 = vsub.s32 %v323, %v325
        %v327 = vrot.slane %v319, %v326
        %328 = vrot.lane.b32.xlu0 %v327, 4
        %v329 = vpop.permute.xlu0 %328
        %v330 = vrot.slane %v329, 6
        %vm331 = vcmask 31744
        %v332 = vsel %vm331, %v330, %v329
        %vm334 = vcmask 1041440
        %vm335 = vcmask 27650
        %vm336 = vmor %vm335, %vm334
        %337 = vst.msk [vmem:[#allocation2] sm:$0xf] %vm336, %v332
        %v338 = vld [vmem:[#allocation2] sm:$0x3]
        %v339 = vld [vmem:[#allocation2] sm:$0xf]
        %v341 = vcombine.low %v339, %v339
        %v343 = vunpack.c.l.s4 1983009808
        %v344 = vunpack.c.0.s8 %v343
        %v345 = vlaneseq
        %v346 = vshrl.u32 %v345, 7
        %v347 = vsub.s32 %v344, %v346
        %v348 = vrot.slane %v341, %v347
        %v350 = vunpack.c.l.s4 1983009808
        %v351 = vunpack.c.0.s8 %v350
        %v352 = vlaneseq
        %v353 = vshrl.u32 %v352, 7
        %v354 = vsub.s32 %v351, %v353
        %v355 = vrot.slane %v339, %v354
        %v356 = vcombine.high %v348, %v348
        %357 = vrot.lane.b32.xlu0 %v348, 126
        %v358 = vpop.permute.xlu0 %357
        %359 = vrot.lane.b32.xlu0 %v356, 126
        %v360 = vpop.permute.xlu0 %359
        %vm361 = vcmask 1031168
        %v362 = vsel %vm361, %v358, %v360
        %v363 = vcombine.low %v355, %v355
        %364 = vrot.lane.b32.xlu0 %v363, 124
        %v365 = vpop.permute.xlu0 %364
        %366 = vrot.lane.b32.xlu0 %v355, 124
        %v367 = vpop.permute.xlu0 %366
        %vm368 = vcmask 1014784
        %v369 = vsel %vm368, %v365, %v367
        %vm370 = vcmask 1041408
        %v373 = vsel %vm370, %v338, %v362
        %vm374 = vcmask 1043456
        %v376 = vsel %vm374, %v373, %v369
        %v377 = vld [vmem:[%s1] sm:$0xf]
        %v378 = vld [vmem:[%s2] sm:$0xff]
        %380 = vset.pattern.permute.xlu0 0
        %381 = vperm.xlu0 %380, %v378
        %v382 = vpop.permute.xlu0 %381
        %vm384 = vcmask 97280
        %v386 = vsel %vm384, %v377, 0
        %vm388 = vcmask 1045504
        %v389 = vsel %vm388, %v376, 0
        %391 = vmatprep.subr.bf16.mxu0 0
        %392 = vmatpush1.bf16.msra.mxu0 %v389
        %393 = vmatprep.subr.bf16.mxu0 0
        %394 = vmatpush1.bf16.msra.mxu0 0
        %395 = vmatprep.subr.bf16.mxu0 0
        %396 = vmatpush1.bf16.msra.mxu0 0
        %397 = vmatprep.subr.bf16.mxu0 0
        %398 = vmatpush1.bf16.msra.mxu0 0
        %399 = vmatprep.subr.bf16.mxu0 0
        %400 = vmatpush1.bf16.msra.mxu0 0
        %401 = vmatprep.subr.bf16.mxu0 0
        %402 = vmatpush1.bf16.msra.mxu0 0
        %403 = vmatprep.subr.bf16.mxu0 0
        %404 = vmatpush1.bf16.msra.mxu0 0
        %405 = vmatprep.subr.bf16.mxu0 0
        %406 = vmatpush1.bf16.msra.mxu0 0
        %407 = vmatprep.subr.bf16.mxu0 0
        %408 = vmatpush1.bf16.msra.mxu0 0
        %409 = vmatprep.subr.bf16.mxu0 0
        %410 = vmatpush1.bf16.msra.mxu0 0
        %411 = vmatprep.subr.bf16.mxu0 0
        %412 = vmatpush1.bf16.msra.mxu0 0
        %413 = vmatprep.subr.bf16.mxu0 0
        %414 = vmatpush1.bf16.msra.mxu0 0
        %415 = vmatprep.subr.bf16.mxu0 0
        %416 = vmatpush1.bf16.msra.mxu0 0
        %417 = vmatprep.subr.bf16.mxu0 0
        %418 = vmatpush1.bf16.msra.mxu0 0
        %419 = vmatprep.subr.bf16.mxu0 0
        %420 = vmatpush1.bf16.msra.mxu0 0
        %421 = vmatprep.subr.bf16.mxu0 0
        %422 = vmatpush1.bf16.msra.mxu0 0
        %423 = vmatprep.mubr.bf16.mxu0 0
        %424 = vmatmul.mubr.bf16.gmra.mrb[0].mxu0 %v386
        %v425 = vpop.f32.mrb[0].mxu0
        %v426 = vadd.f32 %v382, %v425
        %v427 = vpop.f32.mrb[0].mxu0
        %v428 = vpop.f32.mrb[0].mxu0
        %v429 = vpop.f32.mrb[0].mxu0
        %430 = vdwg.mxu0
        %v431 = vmax.f32 %v426, 0.0
        %v432 = vpack.c.bf16 %v431, %v431
        %v434 = vunpack.c.l.b16 %v432
        %v435 = vpack.c.b16 %v434, %v434
        %436 = vrot.lane.b32.xlu0 %v435, 4
        %v437 = vpop.permute.xlu0 %436
        %v438 = vrot.slane %v437, 4
        %v439 = vsel %vm331, %v438, %v437
        %vm441 = vcmask 1043488
        %vm442 = vcmask 31748
        %vm443 = vmor %vm442, %vm441
        %444 = vst.msk [vmem:[#allocation3] sm:$0xff] %vm443, %v439
        %v445 = vld [vmem:[#allocation3] sm:$0xf]
        %v446 = vld [vmem:[#allocation3] sm:$0xff]
        %v448 = vunpack.c.l.b16 %v446
        %v449 = vunpack.c.h.b16 %v446
        %v450 = vpack.c.b16 %v448, %v448
        %v451 = vpack.c.b16 %v449, %v449
        %452 = vrot.lane.b32.xlu0 %v450, 126
        %v453 = vpop.permute.xlu0 %452
        %454 = vrot.lane.b32.xlu0 %v451, 126
        %v455 = vpop.permute.xlu0 %454
        %v456 = vsel %vm361, %v453, %v455
        %457 = vrot.lane.b32.xlu0 %v450, 124
        %v458 = vpop.permute.xlu0 %457
        %459 = vrot.lane.b32.xlu0 %v451, 124
        %v460 = vpop.permute.xlu0 %459
        %v461 = vsel %vm368, %v458, %v460
        %v464 = vsel %vm374, %v445, %v456
        %v466 = vld [vmem:[%s3] sm:$0xf]
        %v467 = vld [vmem:[%s4] sm:$0xff]
        %469 = vset.pattern.permute.xlu0 0
        %470 = vperm.xlu0 %469, %v467
        %v471 = vpop.permute.xlu0 %470
        %vm473 = vcmask 195584
        %v475 = vsel %vm473, %v466, 0
        %v478 = vsel %vm374, %v461, 0
        %480 = vmatprep.subr.bf16.mxu0 0
        %481 = vmatpush1.bf16.msra.mxu0 %v464
        %482 = vmatprep.subr.bf16.mxu0 0
        %483 = vmatpush1.bf16.msra.mxu0 %v478
        %484 = vmatprep.subr.bf16.mxu0 0
        %485 = vmatpush1.bf16.msra.mxu0 0
        %486 = vmatprep.subr.bf16.mxu0 0
        %487 = vmatpush1.bf16.msra.mxu0 0
        %488 = vmatprep.subr.bf16.mxu0 0
        %489 = vmatpush1.bf16.msra.mxu0 0
        %490 = vmatprep.subr.bf16.mxu0 0
        %491 = vmatpush1.bf16.msra.mxu0 0
        %492 = vmatprep.subr.bf16.mxu0 0
        %493 = vmatpush1.bf16.msra.mxu0 0
        %494 = vmatprep.subr.bf16.mxu0 0
        %495 = vmatpush1.bf16.msra.mxu0 0
        %496 = vmatprep.subr.bf16.mxu0 0
        %497 = vmatpush1.bf16.msra.mxu0 0
        %498 = vmatprep.subr.bf16.mxu0 0
        %499 = vmatpush1.bf16.msra.mxu0 0
        %500 = vmatprep.subr.bf16.mxu0 0
        %501 = vmatpush1.bf16.msra.mxu0 0
        %502 = vmatprep.subr.bf16.mxu0 0
        %503 = vmatpush1.bf16.msra.mxu0 0
        %504 = vmatprep.subr.bf16.mxu0 0
        %505 = vmatpush1.bf16.msra.mxu0 0
        %506 = vmatprep.subr.bf16.mxu0 0
        %507 = vmatpush1.bf16.msra.mxu0 0
        %508 = vmatprep.subr.bf16.mxu0 0
        %509 = vmatpush1.bf16.msra.mxu0 0
        %510 = vmatprep.subr.bf16.mxu0 0
        %511 = vmatpush1.bf16.msra.mxu0 0
        %512 = vmatprep.mubr.bf16.mxu0 0
        %513 = vmatmul.mubr.bf16.gmra.mrb[0].mxu0 %v475
        %v514 = vpop.f32.mrb[0].mxu0
        %v515 = vadd.f32 %v471, %v514
        %v516 = vpop.f32.mrb[0].mxu0
        %v517 = vpop.f32.mrb[0].mxu0
        %v518 = vpop.f32.mrb[0].mxu0
        %519 = vdwg.mxu0
        %v520 = vmax.f32 %v515, 0.0
        %v521 = vld [vmem:[%s5] sm:$0xf]
        %v522 = vld [vmem:[%s6] sm:$0xff]
        %524 = vset.pattern.permute.xlu0 0
        %525 = vperm.xlu0 %524, %v522
        %v526 = vpop.permute.xlu0 %525
        %vm528 = vcmask 31744
        %v530 = vsel %vm528, %v521, 0
        %v533 = vsel %vm370, %v319, 0
        %535 = vmatprep.subr.bf16.mxu0 0
        %536 = vmatpush1.bf16.msra.mxu0 %v533
        %537 = vmatprep.subr.bf16.mxu0 0
        %538 = vmatpush1.bf16.msra.mxu0 0
        %539 = vmatprep.subr.bf16.mxu0 0
        %540 = vmatpush1.bf16.msra.mxu0 0
        %541 = vmatprep.subr.bf16.mxu0 0
        %542 = vmatpush1.bf16.msra.mxu0 0
        %543 = vmatprep.subr.bf16.mxu0 0
        %544 = vmatpush1.bf16.msra.mxu0 0
        %545 = vmatprep.subr.bf16.mxu0 0
        %546 = vmatpush1.bf16.msra.mxu0 0
        %547 = vmatprep.subr.bf16.mxu0 0
        %548 = vmatpush1.bf16.msra.mxu0 0
        %549 = vmatprep.subr.bf16.mxu0 0
        %550 = vmatpush1.bf16.msra.mxu0 0
        %551 = vmatprep.subr.bf16.mxu0 0
        %552 = vmatpush1.bf16.msra.mxu0 0
        %553 = vmatprep.subr.bf16.mxu0 0
        %554 = vmatpush1.bf16.msra.mxu0 0
        %555 = vmatprep.subr.bf16.mxu0 0
        %556 = vmatpush1.bf16.msra.mxu0 0
        %557 = vmatprep.subr.bf16.mxu0 0
        %558 = vmatpush1.bf16.msra.mxu0 0
        %559 = vmatprep.subr.bf16.mxu0 0
        %560 = vmatpush1.bf16.msra.mxu0 0
        %561 = vmatprep.subr.bf16.mxu0 0
        %562 = vmatpush1.bf16.msra.mxu0 0
        %563 = vmatprep.subr.bf16.mxu0 0
        %564 = vmatpush1.bf16.msra.mxu0 0
        %565 = vmatprep.subr.bf16.mxu0 0
        %566 = vmatpush1.bf16.msra.mxu0 0
        %567 = vmatprep.mubr.bf16.mxu0 0
        %568 = vmatmul.mubr.bf16.gmra.mrb[0].mxu0 %v530
        %v569 = vpop.f32.mrb[0].mxu0
        %v570 = vadd.f32 %v526, %v569
        %v571 = vpop.f32.mrb[0].mxu0
        %v572 = vpop.f32.mrb[0].mxu0
        %v573 = vpop.f32.mrb[0].mxu0
        %574 = vdwg.mxu0
        %v575 = vadd.f32 %v520, %v570
        %v576 = vmax.f32 %v575, 0.0
        %577 = vst [vmem:[%s291] sm:$0xff] %v576
        %s578 = sand.u32 %s197, 1
        %s579 = scalar_lea.sflag [#allocation5], %s578
        %s580 = sand.u32 %s197, 1
        %s581 = smul.addr %s580, 8
        %s582 = scalar_lea.vmem [#allocation4], %s581
        // Predicated region
        $region57: #{tpu_custom_call.1} parent=47 // pred_check
          %p583 = pneg %p207
        $region58: #{tpu_custom_call.1} parent=47 // pred_check_branch
          %585 = sbr.rel (%p583) target = $region60
        $region59: #{tpu_custom_call.1} parent=47 // pred_region
          %s587 = ssub.s32 128, 128
          %588 = vsyncadd %s579, %s587
          %s589 = sadd.s32 %s26, %s25
          %s590 = smul.addr %s589, 128
          %s591 = scalar_lea.hbm %s7, %s590
          %s593 = sshll.u32 %s582, 4
          %s594 = int_to_ptr.vmem [resolvable:$true] %s593
          %596 = dma.vmem_to_hbm [thread:$0]  %s594, 128, %s591, %s579
        $region60: #{tpu_custom_call.1} parent=47 // pred_fallthru
          _
      $region48: #{tpu_custom_call.1} parent=5 // pred_fallthru
        _
      %p597 = scmp.le.s32.totalorder 2, %s16
      // Predicated region
      $region61: #{tpu_custom_call.1} parent=5 // pred_check
        %p598 = pneg %p597
      $region62: #{tpu_custom_call.1} parent=5 // pred_check_branch
        %600 = sbr.rel (%p598) target = $region64
      $region63: #{tpu_custom_call.1} parent=5 // pred_region
        %s601 = ssub.s32 %s16, 2
        // Predicated region
        $region65: #{tpu_custom_call.1} parent=63 // pred_check
          %p602 = pneg %p213
        $region66: #{tpu_custom_call.1} parent=63 // pred_check_branch
          %604 = sbr.rel (%p602) target = $region68
        $region67: #{tpu_custom_call.1} parent=63 // pred_region
          %s605 = sand.u32 %s198, 1
          %s606 = scalar_lea.sflag [#allocation5], %s605
          %s607 = sand.u32 %s198, 1
          %s608 = smul.addr %s607, 8
          %s609 = scalar_lea.vmem [#allocation4], %s608
          %610 = dma.done %s606, 128
        $region68: #{tpu_custom_call.1} parent=63 // pred_fallthru
          _
      $region64: #{tpu_custom_call.1} parent=5 // pred_fallthru
        _
    $region6: #{tpu_custom_call.1} parent=1 // loop_footer
      %s20 = sadd.s32 1, %s16
    $region7: #{tpu_custom_call.1} parent=1 // loop_footer_branch
      %15 = sbr.rel target = $region3
    $region8: #{tpu_custom_call.1} parent=1 // loop_exit
      _
    %611 = vsyncpa [#allocation5], 1
    %s612 = scalar_lea.sflag [#allocation5], 1
    %613 = vsyncpa %s612, 1

</llo_original>
